<compile_context>
chip_gen: v5e
topology: v5e:2x2
jax: 0.10.0
libtpu: 0.0.40
codegen_flags: <defaults>
</compile_context>

<pallas_src>
import functools

import jax
import jax.numpy as jnp
from jax.experimental import pallas as pl
from jax.experimental.pallas import tpu as pltpu


def _round_up(x, m):
    return (x + m - 1) // m * m


def _choose_tile(B, block_b, min_steps):
    """Batch tile: lane multiple of 128, <= block_b, and small enough to give
    at least `min_steps` grid steps when B allows (v7x megacore + pipelining)."""
    lane = 128
    cap_user = max(lane, (block_b // lane) * lane)
    cap_whole = _round_up(B, lane)
    cap_steps = max(lane, _round_up(-(-B // min_steps), lane))
    return min(cap_user, cap_whole, cap_steps)


def actor_critic_kernel(state_ref, action_ref,
                        w1_ref, b1_ref, w2_ref, b2_ref, w3_ref, b3_ref,
                        out_ref, *, action_dim):
    A = action_dim
    f32 = jnp.float32
    wdt = w1_ref.dtype                                   # matmul compute dtype

    x = state_ref[...]                                   # [TB, S]

    # -------- fused actor+critic MLP (weights block-concatenated on host) ----
    h = jnp.dot(x, w1_ref[...], preferred_element_type=f32) + b1_ref[...]
    h = jnp.maximum(h, 0.0)
    h = jnp.dot(h.astype(wdt), w2_ref[...], preferred_element_type=f32) + b2_ref[...]
    h = jnp.maximum(h, 0.0)
    fused_out = (jnp.dot(h.astype(wdt), w3_ref[...], preferred_element_type=f32)
                 + b3_ref[...])                          # [TB, A+1] f32

    logits = fused_out[:, :A]                            # [TB, A]

    # -------- stable softmax pieces (no probs materialized, all f32) ---------
    m = jnp.max(logits, axis=-1, keepdims=True)
    z = logits - m                                       # [TB, A]
    ez = jnp.exp(z)

    # one-hot pick of z[t, action_t] (out-of-range actions silently give 0;
    # torch.distributions.Categorical would raise — documented deviation).
    a = action_ref[...]                                  # [TB, 1] int32
    col_ids = jax.lax.broadcasted_iota(jnp.int32, z.shape, 1)
    masked_z = jnp.where(col_ids == a, z, 0.0)           # [TB, A]

    # Tiny iota-built selectors (sub-vreg constants, VPU-only) — replaces the
    # previous lane-axis concatenate + single wide selector.
    rows_a = jax.lax.broadcasted_iota(jnp.int32, (8, A), 0)
    sel0 = jnp.where(rows_a == 0, 1.0, 0.0)              # -> row 0: sum masked_z
    sel1 = jnp.where(rows_a == 1, 1.0, 0.0)              # -> row 1: sum ez
    sel2 = jnp.where(rows_a == 2, 1.0, 0.0)              # -> row 2: sum z*ez
    rows_v = jax.lax.broadcasted_iota(jnp.int32, (8, A + 1), 0)
    cols_v = jax.lax.broadcasted_iota(jnp.int32, (8, A + 1), 1)
    sel3 = jnp.where((rows_v == 3) & (cols_v == A), 1.0, 0.0)  # -> row 3: value

    # Four tiny MXU matmuls: reduce over the action axis AND land the per-row
    # scalars on the LANE axis -> lane-dense [8, TB]; rows 4..7 are zero.
    red = (jnp.einsum("rf,tf->rt", sel0, masked_z, preferred_element_type=f32)
           + jnp.einsum("rf,tf->rt", sel1, ez, preferred_element_type=f32)
           + jnp.einsum("rf,tf->rt", sel2, ez * z, preferred_element_type=f32)
           + jnp.einsum("rf,tf->rt", sel3, fused_out, preferred_element_type=f32))

    z_at_a  = red[0:1, :]          # z[t, action_t]
    sez     = red[1:2, :]          # sum_a exp(z)
    sum_ezz = red[2:3, :]          # sum_a z * exp(z)
    value   = red[3:4, :]          # critic value

    logsez = jnp.log(sez)
    inv_sez = pl.reciprocal(sez, approx=True)            # EUP slot
    inv_sez = inv_sez * (2.0 - sez * inv_sez)            # one Newton step -> ~f32

    logp = z_at_a - logsez                               # log_prob of taken action
    ent = logsez - sum_ezz * inv_sez                     # -sum_a p_a log p_a

    # single unmasked full-tile store; host slices rows 0..2.
    filler = jnp.zeros((5, logp.shape[1]), f32)
    out_ref[...] = jnp.concatenate([logp, value, ent, filler], axis=0)


@functools.partial(jax.jit, static_argnames=("block_b", "min_steps"))
def actor_critic_evaluate(state, action, fused, *, block_b=4096, min_steps=2):
    """Pallas-backed equivalent of ActorCritic.evaluate(state, action)."""
    B, S = state.shape
    H2 = fused["w1"].shape[1]              # 2 * hidden_dim
    A = fused["w3"].shape[1] - 1           # action_dim
    wdt = fused["w1"].dtype                # matmul dtype (f32 or bf16)

    # TODO(synk): pass `state` already in `wdt` (bf16) upstream to skip this cast pass.
    if state.dtype != wdt:
        state = state.astype(wdt)

    tb = _choose_tile(B, block_b, min_steps)
    steps = -(-B // tb)                    # cdiv; ragged final input block
    Bp = steps * tb                        # output allocated padded -> no ragged stores

    action2d = action.astype(jnp.int32).reshape(B, 1)

    const = lambda i: (0, 0)               # weights stay VMEM-resident
    kernel = functools.partial(actor_critic_kernel, action_dim=A)

    out = pl.pallas_call(
        kernel,
        out_shape=jax.ShapeDtypeStruct((8, Bp), jnp.float32),
        grid_spec=pltpu.PrefetchScalarGridSpec(
            num_scalar_prefetch=0,
            grid=(steps,),
            in_specs=[
                pl.BlockSpec((tb, S), lambda i: (i, 0)),        # state tile
                pl.BlockSpec((tb, 1), lambda i: (i, 0)),        # action tile
                pl.BlockSpec((S, H2), const),                   # fused W1
                pl.BlockSpec((1, H2), const),                   # fused b1
                pl.BlockSpec((H2, H2), const),                  # fused W2
                pl.BlockSpec((1, H2), const),                   # fused b2
                pl.BlockSpec((H2, A + 1), const),               # fused W3
                pl.BlockSpec((1, A + 1), const),                # fused b3
            ],
            out_specs=pl.BlockSpec((8, tb), lambda i: (0, i)),  # lane-dense
        ),
        compiler_params=pltpu.CompilerParams(
            dimension_semantics=("parallel",),
            # 32 MiB scoped VMEM fits tb<=4096 with headroom on v7x's 64 MiB;
            # on v5e/v6e (128 MiB) this can be raised with larger block_b.
            vmem_limit_bytes=32 * 1024 * 1024,
        ),
    )(state, action2d,
      fused["w1"], fused["b1"], fused["w2"], fused["b2"],
      fused["w3"], fused["b3"])

    # Match PyTorch return conventions: [B], [B, 1], [B].
    logp = out[0, :B]
    value = out[1, :B][:, None]
    ent = out[2, :B]
    return logp, value, ent


# ----------------------------- parameter helpers -----------------------------

def init_linear(key, fan_in, fan_out):
    """Deterministic kaiming-uniform-style init; weights stored as [in, out]."""
    kw, kb = jax.random.split(key)
    bound = jnp.sqrt(6.0 / fan_in)
    w = jax.random.uniform(kw, (fan_in, fan_out), jnp.float32, -bound, bound)
    b_bound = 1.0 / jnp.sqrt(fan_in)
    b = jax.random.uniform(kb, (1, fan_out), jnp.float32, -b_bound, b_bound)
    return w, b


def make_params(key, state_dim, action_dim, hidden_dim):
    keys = jax.random.split(key, 6)
    aw1, ab1 = init_linear(keys[0], state_dim, hidden_dim)
    aw2, ab2 = init_linear(keys[1], hidden_dim, hidden_dim)
    aw3, ab3 = init_linear(keys[2], hidden_dim, action_dim)
    cw1, cb1 = init_linear(keys[3], state_dim, hidden_dim)
    cw2, cb2 = init_linear(keys[4], hidden_dim, hidden_dim)
    cw3, cb3 = init_linear(keys[5], hidden_dim, 1)
    return dict(aw1=aw1, ab1=ab1, aw2=aw2, ab2=ab2, aw3=aw3, ab3=ab3,
                cw1=cw1, cb1=cb1, cw2=cw2, cb2=cb2, cw3=cw3, cb3=cb3)


def fuse_params(p, matmul_dtype=jnp.float32):
    """Host-side fusion of actor & critic into one block-diagonal MLP.

    NOTE: the zero blocks ride for free only while 2*hidden <= one MXU tile
    (128 on v5e, 256 on v6e/v7x).  If hidden_dim is ever scaled past that,
    split back into separate actor/critic matmuls to avoid doubling MXU work.
    """
    S, H = p["aw1"].shape
    A = p["aw3"].shape[1]
    zH = jnp.zeros((H, H), jnp.float32)

    w1 = jnp.concatenate([p["aw1"], p["cw1"]], axis=1)                  # [S, 2H]
    b1 = jnp.concatenate([p["ab1"], p["cb1"]], axis=1)                  # [1, 2H]
    w2 = jnp.concatenate(
        [jnp.concatenate([p["aw2"], zH], axis=1),
         jnp.concatenate([zH, p["cw2"]], axis=1)], axis=0)              # [2H, 2H]
    b2 = jnp.concatenate([p["ab2"], p["cb2"]], axis=1)                  # [1, 2H]
    w3 = jnp.concatenate(
        [jnp.concatenate([p["aw3"], jnp.zeros((H, 1), jnp.float32)], axis=1),
         jnp.concatenate([jnp.zeros((H, A), jnp.float32), p["cw3"]], axis=1)],
        axis=0)                                                         # [2H, A+1]
    b3 = jnp.concatenate([p["ab3"], p["cb3"]], axis=1)                  # [1, A+1]

    # Weights in the matmul dtype (bf16 recommended on v5e/v6e); biases f32.
    return dict(w1=w1.astype(matmul_dtype), b1=b1,
                w2=w2.astype(matmul_dtype), b2=b2,
                w3=w3.astype(matmul_dtype), b3=b3)


def reference_evaluate(state, action, p):
    """Pure-JAX reference mirroring the PyTorch module (unfused, f32)."""
    def mlp(x, w1, b1, w2, b2, w3, b3):
        h = jnp.maximum(x @ w1 + b1, 0.0)
        h = jnp.maximum(h @ w2 + b2, 0.0)
        return h @ w3 + b3

    logits = mlp(state, p["aw1"], p["ab1"], p["aw2"], p["ab2"], p["aw3"], p["ab3"])
    log_probs = jax.nn.log_softmax(logits, axis=-1)
    probs = jnp.exp(log_probs)
    logp_a = jnp.take_along_axis(log_probs, action[:, None], axis=-1)[:, 0]
    ent = -jnp.sum(probs * log_probs, axis=-1)
    value = mlp(state, p["cw1"], p["cb1"], p["cw2"], p["cb2"], p["cw3"], p["cb3"])
    return logp_a, value, ent


if __name__ == "__main__":
    # Small shapes consistent with the module: state_dim=16, action_dim=4, hidden=32.
    # B=300 with block_b=128 exercises a multi-step grid (steps=3) including a
    # ragged final input block (no host-side padding copy).
    B, STATE_DIM, ACTION_DIM, HIDDEN_DIM = 300, 16, 4, 32

    key = jax.random.PRNGKey(0)
    k_params, k_state, k_action = jax.random.split(key, 3)

    params = make_params(k_params, STATE_DIM, ACTION_DIM, HIDDEN_DIM)
    state = jax.random.normal(k_state, (B, STATE_DIM), jnp.float32)
    action = jax.random.randint(k_action, (B,), 0, ACTION_DIM, jnp.int32)

    ref_logp, ref_value, ref_ent = reference_evaluate(state, action, params)

    # ---- f32 path (tight tolerances), small tile -> multi-step ragged grid ----
    fused_f32 = fuse_params(params, jnp.float32)
    logp, value, ent = actor_critic_evaluate(state, action, fused_f32, block_b=128)
    jax.block_until_ready((logp, value, ent))
    assert logp.shape == (B,) and value.shape == (B, 1) and ent.shape == (B,)
    assert jnp.allclose(logp, ref_logp, rtol=1e-3, atol=1e-3)
    assert jnp.allclose(value, ref_value, rtol=1e-3, atol=1e-3)
    assert jnp.allclose(ent, ref_ent, rtol=1e-3, atol=1e-3)   # Newton-refined recip

    # ---- bf16 matmul path (default tile), relaxed tolerance ------------------
    fused_bf16 = fuse_params(params, jnp.bfloat16)
    logp_b, value_b, ent_b = actor_critic_evaluate(state, action, fused_bf16)
    jax.block_until_ready((logp_b, value_b, ent_b))
    assert jnp.allclose(logp_b, ref_logp, rtol=1e-1, atol=1e-1)
    assert jnp.allclose(value_b, ref_value, rtol=1e-1, atol=1e-1)
    assert jnp.allclose(ent_b, ref_ent, rtol=1e-1, atol=1e-1)

    print("KERNEL_OK")
</pallas_src>

<mosaic_0001>
module attributes {stable_mosaic.version = 11 : i64} {
  func.func @actor_critic_kernel(%arg0: i32, %arg1: memref<128x16xf32, #tpu.memory_space<vmem>>, %arg2: memref<128x1xi32, #tpu.memory_space<vmem>>, %arg3: memref<16x64xf32, #tpu.memory_space<vmem>>, %arg4: memref<1x64xf32, #tpu.memory_space<vmem>>, %arg5: memref<64x64xf32, #tpu.memory_space<vmem>>, %arg6: memref<1x64xf32, #tpu.memory_space<vmem>>, %arg7: memref<64x5xf32, #tpu.memory_space<vmem>>, %arg8: memref<1x5xf32, #tpu.memory_space<vmem>>, %arg9: memref<8x128xf32, #tpu.memory_space<vmem>>) attributes {dimension_semantics = [#tpu.dimension_semantics<parallel>], iteration_bounds = array<i64: 3>, scalar_prefetch = 0 : i64, scratch_operands = 0 : i64, tpu.core_type = #tpu.core_type<tc>, window_params = [{transform_indices = @transform_0, window_bounds = array<i64: 128, 16>}, {transform_indices = @transform_1, window_bounds = array<i64: 128, 1>}, {pipeline_mode = #tpu.pipeline_mode<synchronous>, transform_indices = @transform_2, window_bounds = array<i64: 16, 64>}, {pipeline_mode = #tpu.pipeline_mode<synchronous>, transform_indices = @transform_3, window_bounds = array<i64: 1, 64>}, {pipeline_mode = #tpu.pipeline_mode<synchronous>, transform_indices = @transform_4, window_bounds = array<i64: 64, 64>}, {pipeline_mode = #tpu.pipeline_mode<synchronous>, transform_indices = @transform_5, window_bounds = array<i64: 1, 64>}, {pipeline_mode = #tpu.pipeline_mode<synchronous>, transform_indices = @transform_6, window_bounds = array<i64: 64, 5>}, {pipeline_mode = #tpu.pipeline_mode<synchronous>, transform_indices = @transform_7, window_bounds = array<i64: 1, 5>}, {transform_indices = @transform_8, window_bounds = array<i64: 8, 128>}]} {
    %c0 = arith.constant 0 : index
    %c0_0 = arith.constant 0 : index
    %0 = vector.load %arg1[%c0, %c0_0] : memref<128x16xf32, #tpu.memory_space<vmem>>, vector<128x16xf32>
    %c0_1 = arith.constant 0 : index
    %c0_2 = arith.constant 0 : index
    %1 = vector.load %arg3[%c0_1, %c0_2] : memref<16x64xf32, #tpu.memory_space<vmem>>, vector<16x64xf32>
    %cst = arith.constant dense<0.000000e+00> : vector<128x64xf32>
    %2 = tpu.matmul %0, %1, %cst {dimension_numbers = #tpu.dot_dimension_numbers<[1], [0], [0], [1], [0, 0, 1, 1], [], []>} : vector<128x16xf32>, vector<16x64xf32>, vector<128x64xf32> -> vector<128x64xf32>
    %c0_3 = arith.constant 0 : index
    %c0_4 = arith.constant 0 : index
    %3 = vector.load %arg4[%c0_3, %c0_4] : memref<1x64xf32, #tpu.memory_space<vmem>>, vector<1x64xf32>
    %4 = vector.broadcast %3 : vector<1x64xf32> to vector<128x64xf32>
    %5 = arith.addf %2, %4 : vector<128x64xf32>
    %cst_5 = arith.constant 0.000000e+00 : f32
    %6 = vector.broadcast %cst_5 : f32 to vector<128x64xf32>
    %7 = arith.maximumf %5, %6 : vector<128x64xf32>
    %c0_6 = arith.constant 0 : index
    %c0_7 = arith.constant 0 : index
    %8 = vector.load %arg5[%c0_6, %c0_7] : memref<64x64xf32, #tpu.memory_space<vmem>>, vector<64x64xf32>
    %cst_8 = arith.constant dense<0.000000e+00> : vector<128x64xf32>
    %9 = tpu.matmul %7, %8, %cst_8 {dimension_numbers = #tpu.dot_dimension_numbers<[1], [0], [0], [1], [0, 0, 1, 1], [], []>} : vector<128x64xf32>, vector<64x64xf32>, vector<128x64xf32> -> vector<128x64xf32>
    %c0_9 = arith.constant 0 : index
    %c0_10 = arith.constant 0 : index
    %10 = vector.load %arg6[%c0_9, %c0_10] : memref<1x64xf32, #tpu.memory_space<vmem>>, vector<1x64xf32>
    %11 = vector.broadcast %10 : vector<1x64xf32> to vector<128x64xf32>
    %12 = arith.addf %9, %11 : vector<128x64xf32>
    %cst_11 = arith.constant 0.000000e+00 : f32
    %13 = vector.broadcast %cst_11 : f32 to vector<128x64xf32>
    %14 = arith.maximumf %12, %13 : vector<128x64xf32>
    %c0_12 = arith.constant 0 : index
    %c0_13 = arith.constant 0 : index
    %15 = vector.load %arg7[%c0_12, %c0_13] : memref<64x5xf32, #tpu.memory_space<vmem>>, vector<64x5xf32>
    %cst_14 = arith.constant dense<0.000000e+00> : vector<128x5xf32>
    %16 = tpu.matmul %14, %15, %cst_14 {dimension_numbers = #tpu.dot_dimension_numbers<[1], [0], [0], [1], [0, 0, 1, 1], [], []>} : vector<128x64xf32>, vector<64x5xf32>, vector<128x5xf32> -> vector<128x5xf32>
    %c0_15 = arith.constant 0 : index
    %c0_16 = arith.constant 0 : index
    %17 = vector.load %arg8[%c0_15, %c0_16] : memref<1x5xf32, #tpu.memory_space<vmem>>, vector<1x5xf32>
    %18 = vector.broadcast %17 : vector<1x5xf32> to vector<128x5xf32>
    %19 = arith.addf %16, %18 : vector<128x5xf32>
    %20 = vector.extract_strided_slice %19 {offsets = [0, 0], sizes = [128, 4], strides = [1, 1]} : vector<128x5xf32> to vector<128x4xf32>
    %cst_17 = arith.constant dense<0xFF800000> : vector<128xf32>
    %21 = vector.multi_reduction <maximumf>, %20, %cst_17 [1] : vector<128x4xf32> to vector<128xf32>
    %22 = vector.shape_cast %21 : vector<128xf32> to vector<128x1xf32>
    %23 = vector.broadcast %22 : vector<128x1xf32> to vector<128x4xf32>
    %24 = arith.subf %20, %23 : vector<128x4xf32>
    %25 = math.exp %24 : vector<128x4xf32>
    %c0_18 = arith.constant 0 : index
    %c0_19 = arith.constant 0 : index
    %26 = vector.load %arg2[%c0_18, %c0_19] : memref<128x1xi32, #tpu.memory_space<vmem>>, vector<128x1xi32>
    %27 = tpu.iota {dimensions = array<i32: 1>} : vector<128x4xi32>
    %28 = vector.broadcast %26 : vector<128x1xi32> to vector<128x4xi32>
    %29 = arith.cmpi eq, %27, %28 : vector<128x4xi32>
    %cst_20 = arith.constant 0.000000e+00 : f32
    %30 = vector.broadcast %cst_20 : f32 to vector<128x4xf32>
    %31 = arith.select %29, %24, %30 : vector<128x4xi1>, vector<128x4xf32>
    %32 = tpu.iota {dimensions = array<i32: 0>} : vector<8x4xi32>
    %c0_i32 = arith.constant 0 : i32
    %33 = vector.broadcast %c0_i32 : i32 to vector<8x4xi32>
    %34 = arith.cmpi eq, %32, %33 : vector<8x4xi32>
    %cst_21 = arith.constant 1.000000e+00 : f32
    %cst_22 = arith.constant 0.000000e+00 : f32
    %35 = vector.broadcast %cst_21 : f32 to vector<8x4xf32>
    %36 = vector.broadcast %cst_22 : f32 to vector<8x4xf32>
    %37 = arith.select %34, %35, %36 : vector<8x4xi1>, vector<8x4xf32>
    %c1_i32 = arith.constant 1 : i32
    %38 = vector.broadcast %c1_i32 : i32 to vector<8x4xi32>
    %39 = arith.cmpi eq, %32, %38 : vector<8x4xi32>
    %cst_23 = arith.constant 1.000000e+00 : f32
    %cst_24 = arith.constant 0.000000e+00 : f32
    %40 = vector.broadcast %cst_23 : f32 to vector<8x4xf32>
    %41 = vector.broadcast %cst_24 : f32 to vector<8x4xf32>
    %42 = arith.select %39, %40, %41 : vector<8x4xi1>, vector<8x4xf32>
    %c2_i32 = arith.constant 2 : i32
    %43 = vector.broadcast %c2_i32 : i32 to vector<8x4xi32>
    %44 = arith.cmpi eq, %32, %43 : vector<8x4xi32>
    %cst_25 = arith.constant 1.000000e+00 : f32
    %cst_26 = arith.constant 0.000000e+00 : f32
    %45 = vector.broadcast %cst_25 : f32 to vector<8x4xf32>
    %46 = vector.broadcast %cst_26 : f32 to vector<8x4xf32>
    %47 = arith.select %44, %45, %46 : vector<8x4xi1>, vector<8x4xf32>
    %48 = tpu.iota {dimensions = array<i32: 0>} : vector<8x5xi32>
    %49 = tpu.iota {dimensions = array<i32: 1>} : vector<8x5xi32>
    %c3_i32 = arith.constant 3 : i32
    %50 = vector.broadcast %c3_i32 : i32 to vector<8x5xi32>
    %51 = arith.cmpi eq, %48, %50 : vector<8x5xi32>
    %c4_i32 = arith.constant 4 : i32
    %52 = vector.broadcast %c4_i32 : i32 to vector<8x5xi32>
    %53 = arith.cmpi eq, %49, %52 : vector<8x5xi32>
    %54 = arith.andi %51, %53 : vector<8x5xi1>
    %cst_27 = arith.constant 1.000000e+00 : f32
    %cst_28 = arith.constant 0.000000e+00 : f32
    %55 = vector.broadcast %cst_27 : f32 to vector<8x5xf32>
    %56 = vector.broadcast %cst_28 : f32 to vector<8x5xf32>
    %57 = arith.select %54, %55, %56 : vector<8x5xi1>, vector<8x5xf32>
    "tpu.trace_start"() <{level = 10 : i32, message = "rf,tf->rt"}> : () -> ()
    %cst_29 = arith.constant dense<0.000000e+00> : vector<8x128xf32>
    %58 = tpu.matmul %37, %31, %cst_29 {dimension_numbers = #tpu.dot_dimension_numbers<[1], [1], [0], [0], [0, 0, 1, 0], [], []>} : vector<8x4xf32>, vector<128x4xf32>, vector<8x128xf32> -> vector<8x128xf32>
    %cst_30 = arith.constant dense<0.000000e+00> : vector<8x128xf32>
    %59 = tpu.matmul %42, %25, %cst_30 {dimension_numbers = #tpu.dot_dimension_numbers<[1], [1], [0], [0], [0, 0, 1, 0], [], []>} : vector<8x4xf32>, vector<128x4xf32>, vector<8x128xf32> -> vector<8x128xf32>
    "tpu.trace_stop"() : () -> ()
    %60 = arith.addf %58, %59 : vector<8x128xf32>
    %61 = arith.mulf %25, %24 : vector<128x4xf32>
    "tpu.trace_start"() <{level = 10 : i32, message = "rf,tf->rt"}> : () -> ()
    %cst_31 = arith.constant dense<0.000000e+00> : vector<8x128xf32>
    %62 = tpu.matmul %47, %61, %cst_31 {dimension_numbers = #tpu.dot_dimension_numbers<[1], [1], [0], [0], [0, 0, 1, 0], [], []>} : vector<8x4xf32>, vector<128x4xf32>, vector<8x128xf32> -> vector<8x128xf32>
    "tpu.trace_stop"() : () -> ()
    %63 = arith.addf %60, %62 : vector<8x128xf32>
    "tpu.trace_start"() <{level = 10 : i32, message = "rf,tf->rt"}> : () -> ()
    %cst_32 = arith.constant dense<0.000000e+00> : vector<8x128xf32>
    %64 = tpu.matmul %57, %19, %cst_32 {dimension_numbers = #tpu.dot_dimension_numbers<[1], [1], [0], [0], [0, 0, 1, 0], [], []>} : vector<8x5xf32>, vector<128x5xf32>, vector<8x128xf32> -> vector<8x128xf32>
    "tpu.trace_stop"() : () -> ()
    %65 = arith.addf %63, %64 : vector<8x128xf32>
    %66 = vector.extract_strided_slice %65 {offsets = [0, 0], sizes = [1, 128], strides = [1, 1]} : vector<8x128xf32> to vector<1x128xf32>
    %67 = vector.extract_strided_slice %65 {offsets = [1, 0], sizes = [1, 128], strides = [1, 1]} : vector<8x128xf32> to vector<1x128xf32>
    %68 = vector.extract_strided_slice %65 {offsets = [2, 0], sizes = [1, 128], strides = [1, 1]} : vector<8x128xf32> to vector<1x128xf32>
    %69 = vector.extract_strided_slice %65 {offsets = [3, 0], sizes = [1, 128], strides = [1, 1]} : vector<8x128xf32> to vector<1x128xf32>
    %70 = math.log %67 : vector<1x128xf32>
    %71 = tpu.reciprocal %67 {approx = true} : vector<1x128xf32> -> vector<1x128xf32>
    %72 = arith.mulf %67, %71 : vector<1x128xf32>
    %cst_33 = arith.constant 2.000000e+00 : f32
    %73 = vector.broadcast %cst_33 : f32 to vector<1x128xf32>
    %74 = arith.subf %73, %72 : vector<1x128xf32>
    %75 = arith.mulf %71, %74 : vector<1x128xf32>
    %76 = arith.subf %66, %70 : vector<1x128xf32>
    %77 = arith.mulf %68, %75 : vector<1x128xf32>
    %78 = arith.subf %70, %77 : vector<1x128xf32>
    %cst_34 = arith.constant 0.000000e+00 : f32
    %79 = vector.broadcast %cst_34 : f32 to vector<5x128xf32>
    %80 = tpu.concatenate %76, %69, %78, %79 in 0 : vector<1x128xf32>, vector<1x128xf32>, vector<1x128xf32>, vector<5x128xf32> -> vector<8x128xf32>
    %c0_35 = arith.constant 0 : index
    %c0_36 = arith.constant 0 : index
    %81 = vector.load %arg9[%c0_35, %c0_36] : memref<8x128xf32, #tpu.memory_space<vmem>>, vector<8x128xf32>
    tpu.vector_store %arg9[%c0_35, %c0_36], %80 {strides = array<i32>} : memref<8x128xf32, #tpu.memory_space<vmem>>, vector<8x128xf32>,
    return
  }
  func.func @transform_0(%arg0: i32) -> (i32, i32) {
    %c0_i32 = arith.constant 0 : i32
    %c0_i32_0 = arith.constant 0 : i32
    return %arg0, %c0_i32 : i32, i32
  }
  func.func @transform_1(%arg0: i32) -> (i32, i32) {
    %c0_i32 = arith.constant 0 : i32
    %c0_i32_0 = arith.constant 0 : i32
    return %arg0, %c0_i32 : i32, i32
  }
  func.func @transform_2(%arg0: i32) -> (i32, i32) {
    %c0_i32 = arith.constant 0 : i32
    %c0_i32_0 = arith.constant 0 : i32
    %c0_i32_1 = arith.constant 0 : i32
    return %c0_i32, %c0_i32_0 : i32, i32
  }
  func.func @transform_3(%arg0: i32) -> (i32, i32) {
    %c0_i32 = arith.constant 0 : i32
    %c0_i32_0 = arith.constant 0 : i32
    %c0_i32_1 = arith.constant 0 : i32
    return %c0_i32, %c0_i32_0 : i32, i32
  }
  func.func @transform_4(%arg0: i32) -> (i32, i32) {
    %c0_i32 = arith.constant 0 : i32
    %c0_i32_0 = arith.constant 0 : i32
    %c0_i32_1 = arith.constant 0 : i32
    return %c0_i32, %c0_i32_0 : i32, i32
  }
  func.func @transform_5(%arg0: i32) -> (i32, i32) {
    %c0_i32 = arith.constant 0 : i32
    %c0_i32_0 = arith.constant 0 : i32
    %c0_i32_1 = arith.constant 0 : i32
    return %c0_i32, %c0_i32_0 : i32, i32
  }
  func.func @transform_6(%arg0: i32) -> (i32, i32) {
    %c0_i32 = arith.constant 0 : i32
    %c0_i32_0 = arith.constant 0 : i32
    %c0_i32_1 = arith.constant 0 : i32
    return %c0_i32, %c0_i32_0 : i32, i32
  }
  func.func @transform_7(%arg0: i32) -> (i32, i32) {
    %c0_i32 = arith.constant 0 : i32
    %c0_i32_0 = arith.constant 0 : i32
    %c0_i32_1 = arith.constant 0 : i32
    return %c0_i32, %c0_i32_0 : i32, i32
  }
  func.func @transform_8(%arg0: i32) -> (i32, i32) {
    %c0_i32 = arith.constant 0 : i32
    %c0_i32_0 = arith.constant 0 : i32
    return %c0_i32, %arg0 : i32, i32
  }
}

</mosaic_0001>

<llo_original>
// kernel: actor_critic_evaluate.1
$region0: #{actor_critic_evaluate.1}
  #allocation0 [shape = 'u32[]', space=smem, size = 0x4, offset = 0x4, fixed_abs, tag = 'smem constant byte address 0x4 - core index']
  #allocation1 [shape = 'u32[72,128]{1,0:T(1,128)}', space=vmem, size = 0x9000, scoped, tag = 'internal scratch']
  %s0 = inlined_call_operand.vmem [shape: f32[300,16], index: 0, kind: input, shape index: {}]
  %s1 = inlined_call_operand.vmem [shape: s32[300,1], index: 1, kind: input, shape index: {}]
  %s2 = inlined_call_operand.vmem [shape: f32[16,64], index: 2, kind: input, shape index: {}]
  %s3 = inlined_call_operand.vmem [shape: f32[1,64], index: 3, kind: input, shape index: {}]
  %s4 = inlined_call_operand.vmem [shape: f32[64,64], index: 4, kind: input, shape index: {}]
  %s5 = inlined_call_operand.vmem [shape: f32[1,64], index: 5, kind: input, shape index: {}]
  %s6 = inlined_call_operand.vmem [shape: f32[64,5], index: 6, kind: input, shape index: {}]
  %s7 = inlined_call_operand.vmem [shape: f32[1,5], index: 7, kind: input, shape index: {}]
  %s8 = inlined_call_operand.vmem [shape: f32[8,384], index: 8, kind: output, shape index: {}]
  %s9 = sld [smem:[#allocation0]]
  $region65: #{actor_critic_evaluate.1} parent=0
    _
  %s11 = ssub.s32 1, %s9
  %s12 = scalar_select 0, %s11, %s9
  loop: start=0, step=1, limit=5
  $region2: #{actor_critic_evaluate.1} parent=0 // loop_pre_header
    _
  $region3: #{actor_critic_evaluate.1} parent=0 // loop_header
    %s14 = sphi 0, %s18
    %p15 = scmp.ge.s32.totalorder %s14, 5
    %s24 = sphi 0, %s26
    %s27 = sphi 0, %s24
    %s28 = sphi 0, %s27
    %s44 = sphi 0, %s28
    %s50 = sphi 0, %s52
    %s53 = sphi 0, %s50
    %s54 = sphi 0, %s53
    %s70 = sphi 0, %s54
    %s74 = sphi 0, %s74
    %s76 = sphi 0, %s74
    %s77 = sphi 0, %s76
    %s91 = sphi 0, %s77
    %s95 = sphi 0, %s95
    %s97 = sphi 0, %s95
    %s98 = sphi 0, %s97
    %s112 = sphi 0, %s98
    %s116 = sphi 0, %s116
    %s118 = sphi 0, %s116
    %s119 = sphi 0, %s118
    %s133 = sphi 0, %s119
    %s137 = sphi 0, %s137
    %s139 = sphi 0, %s137
    %s140 = sphi 0, %s139
    %s154 = sphi 0, %s140
    %s158 = sphi 0, %s158
    %s160 = sphi 0, %s158
    %s161 = sphi 0, %s160
    %s175 = sphi 0, %s161
    %s179 = sphi 0, %s179
    %s181 = sphi 0, %s179
    %s182 = sphi 0, %s181
    %s196 = sphi 0, %s182
    %s202 = sphi 0, %s204
    %s205 = sphi 0, %s202
    %s206 = sphi 0, %s205
    %s222 = sphi 0, %s206
  $region4: #{actor_critic_evaluate.1} parent=0 // loop_header_branch
    %17 = sbr.rel (%p15) target = $region8
  $region5: #{actor_critic_evaluate.1} parent=0 // loop_body
    %s19 = ssub.s32 %s14, 1
    %s20 = ssub.s32 %s14, 2
    %s21 = sadd.s32 %s14, 1
    %s22 = ssub.s32 %s14, %s21
    %p23 = scmp.eq.s32.totalorder %s22, 0
    %s25 = sadd.s32 %s24, 1
    %s26 = scalar_select %p23, %s24, %s25
    %p29 = pneg %p23
    %p30 = scmp.eq.s32.totalorder %s14, 2
    %p31 = por %p29, %p30
    %p32 = scmp.ne.s32.totalorder %s24, %s27
    %p33 = scmp.eq.s32.totalorder %s14, 0
    %p34 = por %p32, %p33
    %p35 = scmp.ne.s32.totalorder %s24, %s27
    %p36 = scmp.eq.s32.totalorder %s19, 2
    %p37 = por %p35, %p36
    %p38 = scmp.ne.s32.totalorder %s27, %s28
    %p39 = scmp.eq.s32.totalorder %s19, 0
    %p40 = por %p38, %p39
    %p41 = scmp.ne.s32.totalorder %s27, %s28
    %p42 = scmp.eq.s32.totalorder %s20, 2
    %p43 = por %p41, %p42
    %p45 = scmp.ne.s32.totalorder %s28, %s44
    %p46 = scmp.eq.s32.totalorder %s20, 0
    %p47 = por %p45, %p46
    %s48 = ssub.s32 %s14, %s21
    %p49 = scmp.eq.s32.totalorder %s48, 0
    %s51 = sadd.s32 %s50, 1
    %s52 = scalar_select %p49, %s50, %s51
    %p55 = pneg %p49
    %p56 = scmp.eq.s32.totalorder %s14, 2
    %p57 = por %p55, %p56
    %p58 = scmp.ne.s32.totalorder %s50, %s53
    %p59 = scmp.eq.s32.totalorder %s14, 0
    %p60 = por %p58, %p59
    %p61 = scmp.ne.s32.totalorder %s50, %s53
    %p62 = scmp.eq.s32.totalorder %s19, 2
    %p63 = por %p61, %p62
    %p64 = scmp.ne.s32.totalorder %s53, %s54
    %p65 = scmp.eq.s32.totalorder %s19, 0
    %p66 = por %p64, %p65
    %p67 = scmp.ne.s32.totalorder %s53, %s54
    %p68 = scmp.eq.s32.totalorder %s20, 2
    %p69 = por %p67, %p68
    %p71 = scmp.ne.s32.totalorder %s54, %s70
    %p72 = scmp.eq.s32.totalorder %s20, 0
    %p73 = por %p71, %p72
    %s75 = sadd.s32 %s74, 1
    %p78 = scmp.eq.s32.totalorder %s14, 2
    %p79 = scmp.ne.s32.totalorder %s74, %s76
    %p80 = scmp.eq.s32.totalorder %s14, 0
    %p81 = por %p79, %p80
    %p82 = scmp.ne.s32.totalorder %s74, %s76
    %p83 = scmp.eq.s32.totalorder %s19, 2
    %p84 = por %p82, %p83
    %p85 = scmp.ne.s32.totalorder %s76, %s77
    %p86 = scmp.eq.s32.totalorder %s19, 0
    %p87 = por %p85, %p86
    %p88 = scmp.ne.s32.totalorder %s76, %s77
    %p89 = scmp.eq.s32.totalorder %s20, 2
    %p90 = por %p88, %p89
    %p92 = scmp.ne.s32.totalorder %s77, %s91
    %p93 = scmp.eq.s32.totalorder %s20, 0
    %p94 = por %p92, %p93
    %s96 = sadd.s32 %s95, 1
    %p99 = scmp.eq.s32.totalorder %s14, 2
    %p100 = scmp.ne.s32.totalorder %s95, %s97
    %p101 = scmp.eq.s32.totalorder %s14, 0
    %p102 = por %p100, %p101
    %p103 = scmp.ne.s32.totalorder %s95, %s97
    %p104 = scmp.eq.s32.totalorder %s19, 2
    %p105 = por %p103, %p104
    %p106 = scmp.ne.s32.totalorder %s97, %s98
    %p107 = scmp.eq.s32.totalorder %s19, 0
    %p108 = por %p106, %p107
    %p109 = scmp.ne.s32.totalorder %s97, %s98
    %p110 = scmp.eq.s32.totalorder %s20, 2
    %p111 = por %p109, %p110
    %p113 = scmp.ne.s32.totalorder %s98, %s112
    %p114 = scmp.eq.s32.totalorder %s20, 0
    %p115 = por %p113, %p114
    %s117 = sadd.s32 %s116, 1
    %p120 = scmp.eq.s32.totalorder %s14, 2
    %p121 = scmp.ne.s32.totalorder %s116, %s118
    %p122 = scmp.eq.s32.totalorder %s14, 0
    %p123 = por %p121, %p122
    %p124 = scmp.ne.s32.totalorder %s116, %s118
    %p125 = scmp.eq.s32.totalorder %s19, 2
    %p126 = por %p124, %p125
    %p127 = scmp.ne.s32.totalorder %s118, %s119
    %p128 = scmp.eq.s32.totalorder %s19, 0
    %p129 = por %p127, %p128
    %p130 = scmp.ne.s32.totalorder %s118, %s119
    %p131 = scmp.eq.s32.totalorder %s20, 2
    %p132 = por %p130, %p131
    %p134 = scmp.ne.s32.totalorder %s119, %s133
    %p135 = scmp.eq.s32.totalorder %s20, 0
    %p136 = por %p134, %p135
    %s138 = sadd.s32 %s137, 1
    %p141 = scmp.eq.s32.totalorder %s14, 2
    %p142 = scmp.ne.s32.totalorder %s137, %s139
    %p143 = scmp.eq.s32.totalorder %s14, 0
    %p144 = por %p142, %p143
    %p145 = scmp.ne.s32.totalorder %s137, %s139
    %p146 = scmp.eq.s32.totalorder %s19, 2
    %p147 = por %p145, %p146
    %p148 = scmp.ne.s32.totalorder %s139, %s140
    %p149 = scmp.eq.s32.totalorder %s19, 0
    %p150 = por %p148, %p149
    %p151 = scmp.ne.s32.totalorder %s139, %s140
    %p152 = scmp.eq.s32.totalorder %s20, 2
    %p153 = por %p151, %p152
    %p155 = scmp.ne.s32.totalorder %s140, %s154
    %p156 = scmp.eq.s32.totalorder %s20, 0
    %p157 = por %p155, %p156
    %s159 = sadd.s32 %s158, 1
    %p162 = scmp.eq.s32.totalorder %s14, 2
    %p163 = scmp.ne.s32.totalorder %s158, %s160
    %p164 = scmp.eq.s32.totalorder %s14, 0
    %p165 = por %p163, %p164
    %p166 = scmp.ne.s32.totalorder %s158, %s160
    %p167 = scmp.eq.s32.totalorder %s19, 2
    %p168 = por %p166, %p167
    %p169 = scmp.ne.s32.totalorder %s160, %s161
    %p170 = scmp.eq.s32.totalorder %s19, 0
    %p171 = por %p169, %p170
    %p172 = scmp.ne.s32.totalorder %s160, %s161
    %p173 = scmp.eq.s32.totalorder %s20, 2
    %p174 = por %p172, %p173
    %p176 = scmp.ne.s32.totalorder %s161, %s175
    %p177 = scmp.eq.s32.totalorder %s20, 0
    %p178 = por %p176, %p177
    %s180 = sadd.s32 %s179, 1
    %p183 = scmp.eq.s32.totalorder %s14, 2
    %p184 = scmp.ne.s32.totalorder %s179, %s181
    %p185 = scmp.eq.s32.totalorder %s14, 0
    %p186 = por %p184, %p185
    %p187 = scmp.ne.s32.totalorder %s179, %s181
    %p188 = scmp.eq.s32.totalorder %s19, 2
    %p189 = por %p187, %p188
    %p190 = scmp.ne.s32.totalorder %s181, %s182
    %p191 = scmp.eq.s32.totalorder %s19, 0
    %p192 = por %p190, %p191
    %p193 = scmp.ne.s32.totalorder %s181, %s182
    %p194 = scmp.eq.s32.totalorder %s20, 2
    %p195 = por %p193, %p194
    %p197 = scmp.ne.s32.totalorder %s182, %s196
    %p198 = scmp.eq.s32.totalorder %s20, 0
    %p199 = por %p197, %p198
    %s200 = ssub.s32 %s14, %s21
    %p201 = scmp.eq.s32.totalorder %s200, 0
    %s203 = sadd.s32 %s202, 1
    %s204 = scalar_select %p201, %s202, %s203
    %p207 = pneg %p201
    %p208 = scmp.eq.s32.totalorder %s14, 2
    %p209 = por %p207, %p208
    %p210 = scmp.ne.s32.totalorder %s202, %s205
    %p211 = scmp.eq.s32.totalorder %s14, 0
    %p212 = por %p210, %p211
    %p213 = scmp.ne.s32.totalorder %s202, %s205
    %p214 = scmp.eq.s32.totalorder %s19, 2
    %p215 = por %p213, %p214
    %p216 = scmp.ne.s32.totalorder %s205, %s206
    %p217 = scmp.eq.s32.totalorder %s19, 0
    %p218 = por %p216, %p217
    %p219 = scmp.ne.s32.totalorder %s205, %s206
    %p220 = scmp.eq.s32.totalorder %s20, 2
    %p221 = por %p219, %p220
    %p223 = scmp.ne.s32.totalorder %s206, %s222
    %p224 = scmp.eq.s32.totalorder %s20, 0
    %p225 = por %p223, %p224
    %p226 = scmp.le.s32.totalorder 1, %s14
    %p227 = scmp.lt.s32.totalorder %s14, 4
    %p228 = pnand %p226, %p227
    %p229 = pneg %p228
    // Predicated region
    $region9: #{actor_critic_evaluate.1} parent=5 // pred_check
      _
    $region10: #{actor_critic_evaluate.1} parent=5 // pred_check_branch
      %231 = sbr.rel (%p228) target = $region12
    $region11: #{actor_critic_evaluate.1} parent=5 // pred_region
      %s232 = ssub.s32 %s14, 1
      // Predicated region
      $region13: #{actor_critic_evaluate.1} parent=11 // pred_check
        %p233 = pneg %p87
      $region14: #{actor_critic_evaluate.1} parent=11 // pred_check_branch
        %235 = sbr.rel (%p233) target = $region16
      $region15: #{actor_critic_evaluate.1} parent=11 // pred_region
        _
      $region16: #{actor_critic_evaluate.1} parent=11 // pred_fallthru
        _
      // Predicated region
      $region17: #{actor_critic_evaluate.1} parent=11 // pred_check
        %p236 = pneg %p108
      $region18: #{actor_critic_evaluate.1} parent=11 // pred_check_branch
        %238 = sbr.rel (%p236) target = $region20
      $region19: #{actor_critic_evaluate.1} parent=11 // pred_region
        _
      $region20: #{actor_critic_evaluate.1} parent=11 // pred_fallthru
        _
      // Predicated region
      $region21: #{actor_critic_evaluate.1} parent=11 // pred_check
        %p239 = pneg %p129
      $region22: #{actor_critic_evaluate.1} parent=11 // pred_check_branch
        %241 = sbr.rel (%p239) target = $region24
      $region23: #{actor_critic_evaluate.1} parent=11 // pred_region
        _
      $region24: #{actor_critic_evaluate.1} parent=11 // pred_fallthru
        _
      // Predicated region
      $region25: #{actor_critic_evaluate.1} parent=11 // pred_check
        %p242 = pneg %p150
      $region26: #{actor_critic_evaluate.1} parent=11 // pred_check_branch
        %244 = sbr.rel (%p242) target = $region28
      $region27: #{actor_critic_evaluate.1} parent=11 // pred_region
        _
      $region28: #{actor_critic_evaluate.1} parent=11 // pred_fallthru
        _
      // Predicated region
      $region29: #{actor_critic_evaluate.1} parent=11 // pred_check
        %p245 = pneg %p171
      $region30: #{actor_critic_evaluate.1} parent=11 // pred_check_branch
        %247 = sbr.rel (%p245) target = $region32
      $region31: #{actor_critic_evaluate.1} parent=11 // pred_region
        _
      $region32: #{actor_critic_evaluate.1} parent=11 // pred_fallthru
        _
      // Predicated region
      $region33: #{actor_critic_evaluate.1} parent=11 // pred_check
        %p248 = pneg %p192
      $region34: #{actor_critic_evaluate.1} parent=11 // pred_check_branch
        %250 = sbr.rel (%p248) target = $region36
      $region35: #{actor_critic_evaluate.1} parent=11 // pred_region
        _
      $region36: #{actor_critic_evaluate.1} parent=11 // pred_fallthru
        _
    $region12: #{actor_critic_evaluate.1} parent=5 // pred_fallthru
      _
    %p251 = scmp.lt.s32.totalorder %s14, 3
    // Predicated region
    $region37: #{actor_critic_evaluate.1} parent=5 // pred_check
      %p252 = pneg %p251
    $region38: #{actor_critic_evaluate.1} parent=5 // pred_check_branch
      %254 = sbr.rel (%p252) target = $region40
    $region39: #{actor_critic_evaluate.1} parent=5 // pred_region
      // Predicated region
      $region41: #{actor_critic_evaluate.1} parent=39 // pred_check
        %p255 = pneg %p34
      $region42: #{actor_critic_evaluate.1} parent=39 // pred_check_branch
        %257 = sbr.rel (%p255) target = $region44
      $region43: #{actor_critic_evaluate.1} parent=39 // pred_region
        %s258 = smul.u32 16, %s14
        %s259 = ssub.s32 38, %s258
        %p260 = scmp.lt.s32.totalorder %s259, 16
        %s261 = scalar_select %p260, %s259, 16
        %s262 = smul.u32 8, %s261
        %p263 = scmp.lt.s32.totalorder %s258, 37
        %s264 = scalar_select %p263, %s258, 37
        %s265 = smul.addr %s264, 8
        %s266 = scalar_lea.vmem %s0, %s265
        %s267 = smul.u32 16, %s14
        %s268 = ssub.s32 38, %s267
        %p269 = scmp.lt.s32.totalorder %s268, 16
        %s270 = scalar_select %p269, %s268, 16
        %s271 = smul.u32 8, %s270
      $region44: #{actor_critic_evaluate.1} parent=39 // pred_fallthru
        _
      // Predicated region
      $region45: #{actor_critic_evaluate.1} parent=39 // pred_check
        %p272 = pneg %p60
      $region46: #{actor_critic_evaluate.1} parent=39 // pred_check_branch
        %274 = sbr.rel (%p272) target = $region48
      $region47: #{actor_critic_evaluate.1} parent=39 // pred_region
        %s275 = smul.u32 16, %s14
        %s276 = ssub.s32 38, %s275
        %p277 = scmp.lt.s32.totalorder %s276, 16
        %s278 = scalar_select %p277, %s276, 16
        %s279 = smul.u32 8, %s278
        %p280 = scmp.lt.s32.totalorder %s275, 37
        %s281 = scalar_select %p280, %s275, 37
        %s282 = smul.addr %s281, 8
        %s283 = scalar_lea.vmem %s1, %s282
        %s284 = smul.u32 16, %s14
        %s285 = ssub.s32 38, %s284
        %p286 = scmp.lt.s32.totalorder %s285, 16
        %s287 = scalar_select %p286, %s285, 16
        %s288 = smul.u32 8, %s287
      $region48: #{actor_critic_evaluate.1} parent=39 // pred_fallthru
        _
    $region40: #{actor_critic_evaluate.1} parent=5 // pred_fallthru
      _
    %p289 = scmp.le.s32.totalorder 1, %s14
    %p290 = scmp.lt.s32.totalorder %s14, 4
    %p291 = pnand %p289, %p290
    %p292 = pneg %p291
    // Predicated region
    $region49: #{actor_critic_evaluate.1} parent=5 // pred_check
      _
    $region50: #{actor_critic_evaluate.1} parent=5 // pred_check_branch
      %294 = sbr.rel (%p291) target = $region52
    $region51: #{actor_critic_evaluate.1} parent=5 // pred_region
      %s295 = ssub.s32 %s14, 1
      %s296 = smul.u32 16, %s19
      %s297 = ssub.s32 38, %s296
      %p298 = scmp.lt.s32.totalorder %s297, 16
      %s299 = scalar_select %p298, %s297, 16
      %s300 = smul.u32 8, %s299
      %p301 = scmp.lt.s32.totalorder %s296, 37
      %s302 = scalar_select %p301, %s296, 37
      %s303 = smul.addr %s302, 8
      %s304 = scalar_lea.vmem %s0, %s303
      %p305 = pneg %p40
      %p306 = pneg %p37
      %s307 = smul.u32 16, %s19
      %s308 = ssub.s32 38, %s307
      %p309 = scmp.lt.s32.totalorder %s308, 16
      %s310 = scalar_select %p309, %s308, 16
      %s311 = smul.u32 8, %s310
      %p312 = scmp.lt.s32.totalorder %s307, 37
      %s313 = scalar_select %p312, %s307, 37
      %s314 = smul.addr %s313, 8
      %s315 = scalar_lea.vmem %s1, %s314
      %p316 = pneg %p66
      %p317 = pneg %p63
      %p318 = pneg %p87
      %p319 = pneg %p84
      %p320 = pneg %p108
      %p321 = pneg %p105
      %p322 = pneg %p129
      %p323 = pneg %p126
      %p324 = pneg %p150
      %p325 = pneg %p147
      %p326 = pneg %p171
      %p327 = pneg %p168
      %p328 = pneg %p192
      %p329 = pneg %p189
      %p330 = pneg %p218
      %p331 = pneg %p215
      %p332 = scmp.lt.s32.totalorder %s19, 2
      %s333 = scalar_select %p332, %s19, 2
      %s334 = smul.addr %s333, 8
      %s335 = scalar_lea.vmem %s8, %s334
      %s336 = smul.u32 16, %s19
      %s337 = ssub.s32 38, %s336
      %p338 = scmp.lt.s32.totalorder %s337, 16
      %s339 = scalar_select %p338, %s337, 16
      %s340 = smul.u32 8, %s339
      %p341 = scmp.lt.s32.totalorder %s336, 37
      %s342 = scalar_select %p341, %s336, 37
      %s343 = smul.addr %s342, 8
      %s344 = scalar_lea.vmem %s0, %s343
      %s345 = smul.u32 16, %s19
      %s346 = ssub.s32 38, %s345
      %p347 = scmp.lt.s32.totalorder %s346, 16
      %s348 = scalar_select %p347, %s346, 16
      %s349 = smul.u32 8, %s348
      %s350 = smul.u32 16, %s19
      %s351 = ssub.s32 38, %s350
      %p352 = scmp.lt.s32.totalorder %s351, 16
      %s353 = scalar_select %p352, %s351, 16
      %s354 = smul.u32 8, %s353
      %p355 = scmp.lt.s32.totalorder %s350, 37
      %s356 = scalar_select %p355, %s350, 37
      %s357 = smul.addr %s356, 8
      %s358 = scalar_lea.vmem %s1, %s357
      %s359 = smul.u32 16, %s19
      %s360 = ssub.s32 38, %s359
      %p361 = scmp.lt.s32.totalorder %s360, 16
      %s362 = scalar_select %p361, %s360, 16
      %s363 = smul.u32 8, %s362
      %p364 = scmp.lt.s32.totalorder %s19, 2
      %s365 = scalar_select %p364, %s19, 2
      %s366 = smul.addr %s365, 8
      %s367 = scalar_lea.vmem %s8, %s366
      %v368 = vld [vmem:[%s344] sm:$0xff]
      %v369 = vld [vmem:[%s344 + $0x8] sm:$0xff]
      %v370 = vld [vmem:[%s344 + $0x10] sm:$0xff]
      %v371 = vld [vmem:[%s344 + $0x18] sm:$0xff]
      %v372 = vld [vmem:[%s344 + $0x20] sm:$0xff]
      %v373 = vld [vmem:[%s344 + $0x28] sm:$0xff]
      %v374 = vld [vmem:[%s344 + $0x30] sm:$0xff]
      %v375 = vld [vmem:[%s344 + $0x38] sm:$0xff]
      %v376 = vld [vmem:[%s344 + $0x40] sm:$0xff]
      %v377 = vld [vmem:[%s344 + $0x48] sm:$0xff]
      %v378 = vld [vmem:[%s344 + $0x50] sm:$0xff]
      %v379 = vld [vmem:[%s344 + $0x58] sm:$0xff]
      %v380 = vld [vmem:[%s344 + $0x60] sm:$0xff]
      %v381 = vld [vmem:[%s344 + $0x68] sm:$0xff]
      %v382 = vld [vmem:[%s344 + $0x70] sm:$0xff]
      %v383 = vld [vmem:[%s344 + $0x78] sm:$0xff]
      %v384 = vld [vmem:[%s2] sm:$0xff]
      %v385 = vld [vmem:[%s2 + $0x8] sm:$0xff]
      %v386 = vld [vmem:[%s3] sm:$0x1]
      %v388 = vperm.slane %v386, 0
      %vm390 = vcmask 130048
      %v392 = vsel %vm390, %v368, 0
      %v395 = vsel %vm390, %v369, 0
      %v398 = vsel %vm390, %v370, 0
      %v401 = vsel %vm390, %v371, 0
      %v404 = vsel %vm390, %v372, 0
      %v407 = vsel %vm390, %v373, 0
      %v410 = vsel %vm390, %v374, 0
      %v413 = vsel %vm390, %v375, 0
      %v416 = vsel %vm390, %v376, 0
      %v419 = vsel %vm390, %v377, 0
      %v422 = vsel %vm390, %v378, 0
      %v425 = vsel %vm390, %v379, 0
      %v428 = vsel %vm390, %v380, 0
      %v431 = vsel %vm390, %v381, 0
      %v434 = vsel %vm390, %v382, 0
      %v437 = vsel %vm390, %v383, 0
      %439 = vmatpush.msra.mxu0 0.0
      %440 = vmatpush.msra.mxu0 0.0
      %441 = vmatpush.msra.mxu0 0.0
      %442 = vmatpush.msra.mxu0 0.0
      %443 = vmatpush.msra.mxu0 0.0
      %444 = vmatpush.msra.mxu0 0.0
      %445 = vmatpush.msra.mxu0 0.0
      %446 = vmatpush.msra.mxu0 0.0
      %447 = vmatpush.msra.mxu0 0.0
      %448 = vmatpush.msra.mxu0 0.0
      %449 = vmatpush.msra.mxu0 0.0
      %450 = vmatpush.msra.mxu0 0.0
      %451 = vmatpush.msra.mxu0 0.0
      %452 = vmatpush.msra.mxu0 0.0
      %453 = vmatpush.msra.mxu0 %v385
      %454 = vmatpush.msra.mxu0 %v384
      %455 = vmatmul.f32.gmra.mxu0 %v392
      %v456 = vpop.f32.mrf.mxu0
      %v457 = vadd.f32 %v388, %v456
      %458 = vmatmul.f32.gmra.mxu0 %v395
      %v459 = vpop.f32.mrf.mxu0
      %v460 = vadd.f32 %v388, %v459
      %461 = vmatmul.f32.gmra.mxu0 %v398
      %v462 = vpop.f32.mrf.mxu0
      %v463 = vadd.f32 %v388, %v462
      %464 = vmatmul.f32.gmra.mxu0 %v401
      %v465 = vpop.f32.mrf.mxu0
      %v466 = vadd.f32 %v388, %v465
      %467 = vmatmul.f32.gmra.mxu0 %v404
      %v468 = vpop.f32.mrf.mxu0
      %v469 = vadd.f32 %v388, %v468
      %470 = vmatmul.f32.gmra.mxu0 %v407
      %v471 = vpop.f32.mrf.mxu0
      %v472 = vadd.f32 %v388, %v471
      %473 = vmatmul.f32.gmra.mxu0 %v410
      %v474 = vpop.f32.mrf.mxu0
      %v475 = vadd.f32 %v388, %v474
      %476 = vmatmul.f32.gmra.mxu0 %v413
      %v477 = vpop.f32.mrf.mxu0
      %v478 = vadd.f32 %v388, %v477
      %479 = vmatmul.f32.gmra.mxu0 %v416
      %v480 = vpop.f32.mrf.mxu0
      %v481 = vadd.f32 %v388, %v480
      %482 = vmatmul.f32.gmra.mxu0 %v419
      %v483 = vpop.f32.mrf.mxu0
      %v484 = vadd.f32 %v388, %v483
      %485 = vmatmul.f32.gmra.mxu0 %v422
      %v486 = vpop.f32.mrf.mxu0
      %v487 = vadd.f32 %v388, %v486
      %488 = vmatmul.f32.gmra.mxu0 %v425
      %v489 = vpop.f32.mrf.mxu0
      %v490 = vadd.f32 %v388, %v489
      %491 = vmatmul.f32.gmra.mxu0 %v428
      %v492 = vpop.f32.mrf.mxu0
      %v493 = vadd.f32 %v388, %v492
      %494 = vmatmul.f32.gmra.mxu0 %v431
      %v495 = vpop.f32.mrf.mxu0
      %v496 = vadd.f32 %v388, %v495
      %497 = vmatmul.f32.gmra.mxu0 %v434
      %v498 = vpop.f32.mrf.mxu0
      %v499 = vadd.f32 %v388, %v498
      %500 = vmatmul.f32.gmra.mxu0 %v437
      %v501 = vpop.f32.mrf.mxu0
      %v502 = vadd.f32 %v388, %v501
      %503 = vdwg.mxu0
      %v504 = vmax.f32 %v457, 0.0
      %v505 = vmax.f32 %v460, 0.0
      %v506 = vmax.f32 %v463, 0.0
      %v507 = vmax.f32 %v466, 0.0
      %v508 = vmax.f32 %v469, 0.0
      %v509 = vmax.f32 %v472, 0.0
      %v510 = vmax.f32 %v475, 0.0
      %v511 = vmax.f32 %v478, 0.0
      %v512 = vmax.f32 %v481, 0.0
      %v513 = vmax.f32 %v484, 0.0
      %v514 = vmax.f32 %v487, 0.0
      %v515 = vmax.f32 %v490, 0.0
      %v516 = vmax.f32 %v493, 0.0
      %v517 = vmax.f32 %v496, 0.0
      %v518 = vmax.f32 %v499, 0.0
      %v519 = vmax.f32 %v502, 0.0
      %v520 = vld [vmem:[%s4] sm:$0xff]
      %v521 = vld [vmem:[%s4 + $0x8] sm:$0xff]
      %v522 = vld [vmem:[%s4 + $0x10] sm:$0xff]
      %v523 = vld [vmem:[%s4 + $0x18] sm:$0xff]
      %v524 = vld [vmem:[%s4 + $0x20] sm:$0xff]
      %v525 = vld [vmem:[%s4 + $0x28] sm:$0xff]
      %v526 = vld [vmem:[%s4 + $0x30] sm:$0xff]
      %v527 = vld [vmem:[%s4 + $0x38] sm:$0xff]
      %v528 = vld [vmem:[%s5] sm:$0x1]
      %v530 = vperm.slane %v528, 0
      %vm532 = vcmask 523264
      %v534 = vsel %vm532, %v504, 0
      %v537 = vsel %vm532, %v505, 0
      %v540 = vsel %vm532, %v506, 0
      %v543 = vsel %vm532, %v507, 0
      %v546 = vsel %vm532, %v508, 0
      %v549 = vsel %vm532, %v509, 0
      %v552 = vsel %vm532, %v510, 0
      %v555 = vsel %vm532, %v511, 0
      %v558 = vsel %vm532, %v512, 0
      %v561 = vsel %vm532, %v513, 0
      %v564 = vsel %vm532, %v514, 0
      %v567 = vsel %vm532, %v515, 0
      %v570 = vsel %vm532, %v516, 0
      %v573 = vsel %vm532, %v517, 0
      %v576 = vsel %vm532, %v518, 0
      %v579 = vsel %vm532, %v519, 0
      %581 = vmatpush.msra.mxu0 0.0
      %582 = vmatpush.msra.mxu0 0.0
      %583 = vmatpush.msra.mxu0 0.0
      %584 = vmatpush.msra.mxu0 0.0
      %585 = vmatpush.msra.mxu0 0.0
      %586 = vmatpush.msra.mxu0 0.0
      %587 = vmatpush.msra.mxu0 0.0
      %588 = vmatpush.msra.mxu0 0.0
      %589 = vmatpush.msra.mxu0 %v527
      %590 = vmatpush.msra.mxu0 %v526
      %591 = vmatpush.msra.mxu0 %v525
      %592 = vmatpush.msra.mxu0 %v524
      %593 = vmatpush.msra.mxu0 %v523
      %594 = vmatpush.msra.mxu0 %v522
      %595 = vmatpush.msra.mxu0 %v521
      %596 = vmatpush.msra.mxu0 %v520
      %597 = vmatmul.f32.gmra.mxu0 %v534
      %v598 = vpop.f32.mrf.mxu0
      %v599 = vadd.f32 %v530, %v598
      %600 = vmatmul.f32.gmra.mxu0 %v537
      %v601 = vpop.f32.mrf.mxu0
      %v602 = vadd.f32 %v530, %v601
      %603 = vmatmul.f32.gmra.mxu0 %v540
      %v604 = vpop.f32.mrf.mxu0
      %v605 = vadd.f32 %v530, %v604
      %606 = vmatmul.f32.gmra.mxu0 %v543
      %v607 = vpop.f32.mrf.mxu0
      %v608 = vadd.f32 %v530, %v607
      %609 = vmatmul.f32.gmra.mxu0 %v546
      %v610 = vpop.f32.mrf.mxu0
      %v611 = vadd.f32 %v530, %v610
      %612 = vmatmul.f32.gmra.mxu0 %v549
      %v613 = vpop.f32.mrf.mxu0
      %v614 = vadd.f32 %v530, %v613
      %615 = vmatmul.f32.gmra.mxu0 %v552
      %v616 = vpop.f32.mrf.mxu0
      %v617 = vadd.f32 %v530, %v616
      %618 = vmatmul.f32.gmra.mxu0 %v555
      %v619 = vpop.f32.mrf.mxu0
      %v620 = vadd.f32 %v530, %v619
      %621 = vmatmul.f32.gmra.mxu0 %v558
      %v622 = vpop.f32.mrf.mxu0
      %v623 = vadd.f32 %v530, %v622
      %624 = vmatmul.f32.gmra.mxu0 %v561
      %v625 = vpop.f32.mrf.mxu0
      %v626 = vadd.f32 %v530, %v625
      %627 = vmatmul.f32.gmra.mxu0 %v564
      %v628 = vpop.f32.mrf.mxu0
      %v629 = vadd.f32 %v530, %v628
      %630 = vmatmul.f32.gmra.mxu0 %v567
      %v631 = vpop.f32.mrf.mxu0
      %v632 = vadd.f32 %v530, %v631
      %633 = vmatmul.f32.gmra.mxu0 %v570
      %v634 = vpop.f32.mrf.mxu0
      %v635 = vadd.f32 %v530, %v634
      %636 = vmatmul.f32.gmra.mxu0 %v573
      %v637 = vpop.f32.mrf.mxu0
      %v638 = vadd.f32 %v530, %v637
      %639 = vmatmul.f32.gmra.mxu0 %v576
      %v640 = vpop.f32.mrf.mxu0
      %v641 = vadd.f32 %v530, %v640
      %642 = vmatmul.f32.gmra.mxu0 %v579
      %v643 = vpop.f32.mrf.mxu0
      %v644 = vadd.f32 %v530, %v643
      %645 = vdwg.mxu0
      %v646 = vmax.f32 %v599, 0.0
      %v647 = vmax.f32 %v602, 0.0
      %v648 = vmax.f32 %v605, 0.0
      %v649 = vmax.f32 %v608, 0.0
      %v650 = vmax.f32 %v611, 0.0
      %v651 = vmax.f32 %v614, 0.0
      %v652 = vmax.f32 %v617, 0.0
      %v653 = vmax.f32 %v620, 0.0
      %v654 = vmax.f32 %v623, 0.0
      %v655 = vmax.f32 %v626, 0.0
      %v656 = vmax.f32 %v629, 0.0
      %v657 = vmax.f32 %v632, 0.0
      %v658 = vmax.f32 %v635, 0.0
      %v659 = vmax.f32 %v638, 0.0
      %v660 = vmax.f32 %v641, 0.0
      %v661 = vmax.f32 %v644, 0.0
      %v662 = vld [vmem:[%s6] sm:$0xff]
      %v663 = vld [vmem:[%s6 + $0x8] sm:$0xff]
      %v664 = vld [vmem:[%s6 + $0x10] sm:$0xff]
      %v665 = vld [vmem:[%s6 + $0x18] sm:$0xff]
      %v666 = vld [vmem:[%s6 + $0x20] sm:$0xff]
      %v667 = vld [vmem:[%s6 + $0x28] sm:$0xff]
      %v668 = vld [vmem:[%s6 + $0x30] sm:$0xff]
      %v669 = vld [vmem:[%s6 + $0x38] sm:$0xff]
      %v670 = vld [vmem:[%s7] sm:$0x1]
      %v672 = vperm.slane %v670, 0
      %v675 = vsel %vm532, %v646, 0
      %v678 = vsel %vm532, %v647, 0
      %v681 = vsel %vm532, %v648, 0
      %v684 = vsel %vm532, %v649, 0
      %v687 = vsel %vm532, %v650, 0
      %v690 = vsel %vm532, %v651, 0
      %v693 = vsel %vm532, %v652, 0
      %v696 = vsel %vm532, %v653, 0
      %v699 = vsel %vm532, %v654, 0
      %v702 = vsel %vm532, %v655, 0
      %v705 = vsel %vm532, %v656, 0
      %v708 = vsel %vm532, %v657, 0
      %v711 = vsel %vm532, %v658, 0
      %v714 = vsel %vm532, %v659, 0
      %v717 = vsel %vm532, %v660, 0
      %v720 = vsel %vm532, %v661, 0
      %722 = vmatpush.msra.mxu0 0.0
      %723 = vmatpush.msra.mxu0 0.0
      %724 = vmatpush.msra.mxu0 0.0
      %725 = vmatpush.msra.mxu0 0.0
      %726 = vmatpush.msra.mxu0 0.0
      %727 = vmatpush.msra.mxu0 0.0
      %728 = vmatpush.msra.mxu0 0.0
      %729 = vmatpush.msra.mxu0 0.0
      %730 = vmatpush.msra.mxu0 %v669
      %731 = vmatpush.msra.mxu0 %v668
      %732 = vmatpush.msra.mxu0 %v667
      %733 = vmatpush.msra.mxu0 %v666
      %734 = vmatpush.msra.mxu0 %v665
      %735 = vmatpush.msra.mxu0 %v664
      %736 = vmatpush.msra.mxu0 %v663
      %737 = vmatpush.msra.mxu0 %v662
      %738 = vmatmul.f32.gmra.mxu0 %v675
      %v739 = vpop.f32.mrf.mxu0
      %v740 = vadd.f32 %v672, %v739
      %741 = vmatmul.f32.gmra.mxu0 %v678
      %v742 = vpop.f32.mrf.mxu0
      %v743 = vadd.f32 %v672, %v742
      %744 = vmatmul.f32.gmra.mxu0 %v681
      %v745 = vpop.f32.mrf.mxu0
      %v746 = vadd.f32 %v672, %v745
      %747 = vmatmul.f32.gmra.mxu0 %v684
      %v748 = vpop.f32.mrf.mxu0
      %v749 = vadd.f32 %v672, %v748
      %750 = vmatmul.f32.gmra.mxu0 %v687
      %v751 = vpop.f32.mrf.mxu0
      %v752 = vadd.f32 %v672, %v751
      %753 = vmatmul.f32.gmra.mxu0 %v690
      %v754 = vpop.f32.mrf.mxu0
      %v755 = vadd.f32 %v672, %v754
      %756 = vmatmul.f32.gmra.mxu0 %v693
      %v757 = vpop.f32.mrf.mxu0
      %v758 = vadd.f32 %v672, %v757
      %759 = vmatmul.f32.gmra.mxu0 %v696
      %v760 = vpop.f32.mrf.mxu0
      %v761 = vadd.f32 %v672, %v760
      %762 = vmatmul.f32.gmra.mxu0 %v699
      %v763 = vpop.f32.mrf.mxu0
      %v764 = vadd.f32 %v672, %v763
      %765 = vmatmul.f32.gmra.mxu0 %v702
      %v766 = vpop.f32.mrf.mxu0
      %v767 = vadd.f32 %v672, %v766
      %768 = vmatmul.f32.gmra.mxu0 %v705
      %v769 = vpop.f32.mrf.mxu0
      %v770 = vadd.f32 %v672, %v769
      %771 = vmatmul.f32.gmra.mxu0 %v708
      %v772 = vpop.f32.mrf.mxu0
      %v773 = vadd.f32 %v672, %v772
      %774 = vmatmul.f32.gmra.mxu0 %v711
      %v775 = vpop.f32.mrf.mxu0
      %v776 = vadd.f32 %v672, %v775
      %777 = vmatmul.f32.gmra.mxu0 %v714
      %v778 = vpop.f32.mrf.mxu0
      %v779 = vadd.f32 %v672, %v778
      %780 = vmatmul.f32.gmra.mxu0 %v717
      %v781 = vpop.f32.mrf.mxu0
      %v782 = vadd.f32 %v672, %v781
      %783 = vmatmul.f32.gmra.mxu0 %v720
      %v784 = vpop.f32.mrf.mxu0
      %v785 = vadd.f32 %v672, %v784
      %786 = vdwg.mxu0
      %vm787 = vcmask 31744
      %v788 = vsel %vm787, %v740, -inf
      %789 = vmax.xlane.f32.xlu0 %v788
      %v790 = vpop.xlane.xlu0 %789
      %v791 = vsel %vm787, %v743, -inf
      %792 = vmax.xlane.f32.xlu0 %v791
      %v793 = vpop.xlane.xlu0 %792
      %v794 = vsel %vm787, %v746, -inf
      %795 = vmax.xlane.f32.xlu0 %v794
      %v796 = vpop.xlane.xlu0 %795
      %v797 = vsel %vm787, %v749, -inf
      %798 = vmax.xlane.f32.xlu0 %v797
      %v799 = vpop.xlane.xlu0 %798
      %v800 = vsel %vm787, %v752, -inf
      %801 = vmax.xlane.f32.xlu0 %v800
      %v802 = vpop.xlane.xlu0 %801
      %v803 = vsel %vm787, %v755, -inf
      %804 = vmax.xlane.f32.xlu0 %v803
      %v805 = vpop.xlane.xlu0 %804
      %v806 = vsel %vm787, %v758, -inf
      %807 = vmax.xlane.f32.xlu0 %v806
      %v808 = vpop.xlane.xlu0 %807
      %v809 = vsel %vm787, %v761, -inf
      %810 = vmax.xlane.f32.xlu0 %v809
      %v811 = vpop.xlane.xlu0 %810
      %v812 = vsel %vm787, %v764, -inf
      %813 = vmax.xlane.f32.xlu0 %v812
      %v814 = vpop.xlane.xlu0 %813
      %v815 = vsel %vm787, %v767, -inf
      %816 = vmax.xlane.f32.xlu0 %v815
      %v817 = vpop.xlane.xlu0 %816
      %v818 = vsel %vm787, %v770, -inf
      %819 = vmax.xlane.f32.xlu0 %v818
      %v820 = vpop.xlane.xlu0 %819
      %v821 = vsel %vm787, %v773, -inf
      %822 = vmax.xlane.f32.xlu0 %v821
      %v823 = vpop.xlane.xlu0 %822
      %v824 = vsel %vm787, %v776, -inf
      %825 = vmax.xlane.f32.xlu0 %v824
      %v826 = vpop.xlane.xlu0 %825
      %v827 = vsel %vm787, %v779, -inf
      %828 = vmax.xlane.f32.xlu0 %v827
      %v829 = vpop.xlane.xlu0 %828
      %v830 = vsel %vm787, %v782, -inf
      %831 = vmax.xlane.f32.xlu0 %v830
      %v832 = vpop.xlane.xlu0 %831
      %v833 = vsel %vm787, %v785, -inf
      %834 = vmax.xlane.f32.xlu0 %v833
      %v835 = vpop.xlane.xlu0 %834
      %v836 = vsub.f32 %v740, %v790
      %v837 = vsub.f32 %v743, %v793
      %v838 = vsub.f32 %v746, %v796
      %v839 = vsub.f32 %v749, %v799
      %v840 = vsub.f32 %v752, %v802
      %v841 = vsub.f32 %v755, %v805
      %v842 = vsub.f32 %v758, %v808
      %v843 = vsub.f32 %v761, %v811
      %v844 = vsub.f32 %v764, %v814
      %v845 = vsub.f32 %v767, %v817
      %v846 = vsub.f32 %v770, %v820
      %v847 = vsub.f32 %v773, %v823
      %v848 = vsub.f32 %v776, %v826
      %v849 = vsub.f32 %v779, %v829
      %v850 = vsub.f32 %v782, %v832
      %v851 = vsub.f32 %v785, %v835
      %v852 = vmul.f32 %v836, 1.442695
      %v853 = vpow.pop %v852
      %v854 = vmul.f32 %v837, 1.442695
      %v855 = vpow.pop %v854
      %v856 = vmul.f32 %v838, 1.442695
      %v857 = vpow.pop %v856
      %v858 = vmul.f32 %v839, 1.442695
      %v859 = vpow.pop %v858
      %v860 = vmul.f32 %v840, 1.442695
      %v861 = vpow.pop %v860
      %v862 = vmul.f32 %v841, 1.442695
      %v863 = vpow.pop %v862
      %v864 = vmul.f32 %v842, 1.442695
      %v865 = vpow.pop %v864
      %v866 = vmul.f32 %v843, 1.442695
      %v867 = vpow.pop %v866
      %v868 = vmul.f32 %v844, 1.442695
      %v869 = vpow.pop %v868
      %v870 = vmul.f32 %v845, 1.442695
      %v871 = vpow.pop %v870
      %v872 = vmul.f32 %v846, 1.442695
      %v873 = vpow.pop %v872
      %v874 = vmul.f32 %v847, 1.442695
      %v875 = vpow.pop %v874
      %v876 = vmul.f32 %v848, 1.442695
      %v877 = vpow.pop %v876
      %v878 = vmul.f32 %v849, 1.442695
      %v879 = vpow.pop %v878
      %v880 = vmul.f32 %v850, 1.442695
      %v881 = vpow.pop %v880
      %v882 = vmul.f32 %v851, 1.442695
      %v883 = vpow.pop %v882
      %v884 = vld [vmem:[%s358] sm:$0xff]
      %v885 = vld [vmem:[%s358 + $0x8] sm:$0xff]
      %v886 = vld [vmem:[%s358 + $0x10] sm:$0xff]
      %v887 = vld [vmem:[%s358 + $0x18] sm:$0xff]
      %v888 = vld [vmem:[%s358 + $0x20] sm:$0xff]
      %v889 = vld [vmem:[%s358 + $0x28] sm:$0xff]
      %v890 = vld [vmem:[%s358 + $0x30] sm:$0xff]
      %v891 = vld [vmem:[%s358 + $0x38] sm:$0xff]
      %v892 = vld [vmem:[%s358 + $0x40] sm:$0xff]
      %v893 = vld [vmem:[%s358 + $0x48] sm:$0xff]
      %v894 = vld [vmem:[%s358 + $0x50] sm:$0xff]
      %v895 = vld [vmem:[%s358 + $0x58] sm:$0xff]
      %v896 = vld [vmem:[%s358 + $0x60] sm:$0xff]
      %v897 = vld [vmem:[%s358 + $0x68] sm:$0xff]
      %v898 = vld [vmem:[%s358 + $0x70] sm:$0xff]
      %v899 = vld [vmem:[%s358 + $0x78] sm:$0xff]
      %v900 = vlaneseq
      %v901 = vand.u32 %v900, 127
      %902 = vset.pattern.permute.xlu0 0
      %903 = vperm.xlu0 %902, %v884
      %v904 = vpop.permute.xlu0 %903
      %905 = vset.pattern.permute.xlu0 0
      %906 = vperm.xlu0 %905, %v885
      %v907 = vpop.permute.xlu0 %906
      %908 = vset.pattern.permute.xlu0 0
      %909 = vperm.xlu0 %908, %v886
      %v910 = vpop.permute.xlu0 %909
      %911 = vset.pattern.permute.xlu0 0
      %912 = vperm.xlu0 %911, %v887
      %v913 = vpop.permute.xlu0 %912
      %914 = vset.pattern.permute.xlu0 0
      %915 = vperm.xlu0 %914, %v888
      %v916 = vpop.permute.xlu0 %915
      %917 = vset.pattern.permute.xlu0 0
      %918 = vperm.xlu0 %917, %v889
      %v919 = vpop.permute.xlu0 %918
      %920 = vset.pattern.permute.xlu0 0
      %921 = vperm.xlu0 %920, %v890
      %v922 = vpop.permute.xlu0 %921
      %923 = vset.pattern.permute.xlu0 0
      %924 = vperm.xlu0 %923, %v891
      %v925 = vpop.permute.xlu0 %924
      %926 = vset.pattern.permute.xlu0 0
      %927 = vperm.xlu0 %926, %v892
      %v928 = vpop.permute.xlu0 %927
      %929 = vset.pattern.permute.xlu0 0
      %930 = vperm.xlu0 %929, %v893
      %v931 = vpop.permute.xlu0 %930
      %932 = vset.pattern.permute.xlu0 0
      %933 = vperm.xlu0 %932, %v894
      %v934 = vpop.permute.xlu0 %933
      %935 = vset.pattern.permute.xlu0 0
      %936 = vperm.xlu0 %935, %v895
      %v937 = vpop.permute.xlu0 %936
      %938 = vset.pattern.permute.xlu0 0
      %939 = vperm.xlu0 %938, %v896
      %v940 = vpop.permute.xlu0 %939
      %941 = vset.pattern.permute.xlu0 0
      %942 = vperm.xlu0 %941, %v897
      %v943 = vpop.permute.xlu0 %942
      %944 = vset.pattern.permute.xlu0 0
      %945 = vperm.xlu0 %944, %v898
      %v946 = vpop.permute.xlu0 %945
      %947 = vset.pattern.permute.xlu0 0
      %948 = vperm.xlu0 %947, %v899
      %v949 = vpop.permute.xlu0 %948
      %vm950 = vcmp.eq.s32.totalorder %v901, %v904
      %vm951 = vcmp.eq.s32.totalorder %v901, %v907
      %vm952 = vcmp.eq.s32.totalorder %v901, %v910
      %vm953 = vcmp.eq.s32.totalorder %v901, %v913
      %vm954 = vcmp.eq.s32.totalorder %v901, %v916
      %vm955 = vcmp.eq.s32.totalorder %v901, %v919
      %vm956 = vcmp.eq.s32.totalorder %v901, %v922
      %vm957 = vcmp.eq.s32.totalorder %v901, %v925
      %vm958 = vcmp.eq.s32.totalorder %v901, %v928
      %vm959 = vcmp.eq.s32.totalorder %v901, %v931
      %vm960 = vcmp.eq.s32.totalorder %v901, %v934
      %vm961 = vcmp.eq.s32.totalorder %v901, %v937
      %vm962 = vcmp.eq.s32.totalorder %v901, %v940
      %vm963 = vcmp.eq.s32.totalorder %v901, %v943
      %vm964 = vcmp.eq.s32.totalorder %v901, %v946
      %vm965 = vcmp.eq.s32.totalorder %v901, %v949
      %v966 = vsel %vm950, %v836, 0.0
      %v967 = vsel %vm951, %v837, 0.0
      %v968 = vsel %vm952, %v838, 0.0
      %v969 = vsel %vm953, %v839, 0.0
      %v970 = vsel %vm954, %v840, 0.0
      %v971 = vsel %vm955, %v841, 0.0
      %v972 = vsel %vm956, %v842, 0.0
      %v973 = vsel %vm957, %v843, 0.0
      %v974 = vsel %vm958, %v844, 0.0
      %v975 = vsel %vm959, %v845, 0.0
      %v976 = vsel %vm960, %v846, 0.0
      %v977 = vsel %vm961, %v847, 0.0
      %v978 = vsel %vm962, %v848, 0.0
      %v979 = vsel %vm963, %v849, 0.0
      %v980 = vsel %vm964, %v850, 0.0
      %v981 = vsel %vm965, %v851, 0.0
      %v982 = vlaneseq
      %v983 = vshrl.u32 %v982, 7
      %vm984 = vcmp.eq.s32.totalorder %v983, 0
      %v985 = vsel %vm984, 1.0, 0.0
      %vm986 = vcmp.eq.s32.totalorder %v983, 1
      %v987 = vsel %vm986, 1.0, 0.0
      %vm988 = vcmp.eq.s32.totalorder %v983, 2
      %v989 = vsel %vm988, 1.0, 0.0
      %vm990 = vcmp.eq.s32.totalorder %v983, 3
      %vm991 = vcmp.eq.s32.totalorder %v901, 4
      %vm992 = vmand %vm990, %vm991
      %v993 = vsel %vm992, 1.0, 0.0
      %v995 = vsel %vm787, %v987, 0
      %v998 = vsel %vm787, %v853, 0
      %v1001 = vsel %vm787, %v855, 0
      %v1004 = vsel %vm787, %v857, 0
      %v1007 = vsel %vm787, %v859, 0
      %v1010 = vsel %vm787, %v861, 0
      %v1013 = vsel %vm787, %v863, 0
      %v1016 = vsel %vm787, %v865, 0
      %v1019 = vsel %vm787, %v867, 0
      %v1022 = vsel %vm787, %v869, 0
      %v1025 = vsel %vm787, %v871, 0
      %v1028 = vsel %vm787, %v873, 0
      %v1031 = vsel %vm787, %v875, 0
      %v1034 = vsel %vm787, %v877, 0
      %v1037 = vsel %vm787, %v879, 0
      %v1040 = vsel %vm787, %v881, 0
      %v1043 = vsel %vm787, %v883, 0
      %1045 = vmatpush.xpose.msra.mxu0 %v1043
      %1046 = vmatpush.xpose.msra.mxu0 %v1040
      %1047 = vmatpush.xpose.msra.mxu0 %v1037
      %1048 = vmatpush.xpose.msra.mxu0 %v1034
      %1049 = vmatpush.xpose.msra.mxu0 %v1031
      %1050 = vmatpush.xpose.msra.mxu0 %v1028
      %1051 = vmatpush.xpose.msra.mxu0 %v1025
      %1052 = vmatpush.xpose.msra.mxu0 %v1022
      %1053 = vmatpush.xpose.msra.mxu0 %v1019
      %1054 = vmatpush.xpose.msra.mxu0 %v1016
      %1055 = vmatpush.xpose.msra.mxu0 %v1013
      %1056 = vmatpush.xpose.msra.mxu0 %v1010
      %1057 = vmatpush.xpose.msra.mxu0 %v1007
      %1058 = vmatpush.xpose.msra.mxu0 %v1004
      %1059 = vmatpush.xpose.msra.mxu0 %v1001
      %1060 = vmatpush.xpose.msra.mxu0 %v998
      %1061 = vmatmul.f32.gmra.mxu0 %v995
      %v1062 = vpop.f32.mrf.mxu0
      %v1063 = vadd.f32 0.0, %v1062
      %1064 = vdwg.mxu0
      %v1066 = vsel %vm787, %v985, 0
      %v1069 = vsel %vm787, %v966, 0
      %v1072 = vsel %vm787, %v967, 0
      %v1075 = vsel %vm787, %v968, 0
      %v1078 = vsel %vm787, %v969, 0
      %v1081 = vsel %vm787, %v970, 0
      %v1084 = vsel %vm787, %v971, 0
      %v1087 = vsel %vm787, %v972, 0
      %v1090 = vsel %vm787, %v973, 0
      %v1093 = vsel %vm787, %v974, 0
      %v1096 = vsel %vm787, %v975, 0
      %v1099 = vsel %vm787, %v976, 0
      %v1102 = vsel %vm787, %v977, 0
      %v1105 = vsel %vm787, %v978, 0
      %v1108 = vsel %vm787, %v979, 0
      %v1111 = vsel %vm787, %v980, 0
      %v1114 = vsel %vm787, %v981, 0
      %1116 = vmatpush.xpose.msra.mxu0 %v1114
      %1117 = vmatpush.xpose.msra.mxu0 %v1111
      %1118 = vmatpush.xpose.msra.mxu0 %v1108
      %1119 = vmatpush.xpose.msra.mxu0 %v1105
      %1120 = vmatpush.xpose.msra.mxu0 %v1102
      %1121 = vmatpush.xpose.msra.mxu0 %v1099
      %1122 = vmatpush.xpose.msra.mxu0 %v1096
      %1123 = vmatpush.xpose.msra.mxu0 %v1093
      %1124 = vmatpush.xpose.msra.mxu0 %v1090
      %1125 = vmatpush.xpose.msra.mxu0 %v1087
      %1126 = vmatpush.xpose.msra.mxu0 %v1084
      %1127 = vmatpush.xpose.msra.mxu0 %v1081
      %1128 = vmatpush.xpose.msra.mxu0 %v1078
      %1129 = vmatpush.xpose.msra.mxu0 %v1075
      %1130 = vmatpush.xpose.msra.mxu0 %v1072
      %1131 = vmatpush.xpose.msra.mxu0 %v1069
      %1132 = vmatmul.f32.gmra.mxu0 %v1066
      %v1133 = vpop.f32.mrf.mxu0
      %v1134 = vadd.f32 %v1063, %v1133
      %1135 = vdwg.mxu0
      %v1136 = vmul.f32 %v853, %v836
      %v1137 = vmul.f32 %v855, %v837
      %v1138 = vmul.f32 %v857, %v838
      %v1139 = vmul.f32 %v859, %v839
      %v1140 = vmul.f32 %v861, %v840
      %v1141 = vmul.f32 %v863, %v841
      %v1142 = vmul.f32 %v865, %v842
      %v1143 = vmul.f32 %v867, %v843
      %v1144 = vmul.f32 %v869, %v844
      %v1145 = vmul.f32 %v871, %v845
      %v1146 = vmul.f32 %v873, %v846
      %v1147 = vmul.f32 %v875, %v847
      %v1148 = vmul.f32 %v877, %v848
      %v1149 = vmul.f32 %v879, %v849
      %v1150 = vmul.f32 %v881, %v850
      %v1151 = vmul.f32 %v883, %v851
      %v1153 = vsel %vm787, %v989, 0
      %v1156 = vsel %vm787, %v1136, 0
      %v1159 = vsel %vm787, %v1137, 0
      %v1162 = vsel %vm787, %v1138, 0
      %v1165 = vsel %vm787, %v1139, 0
      %v1168 = vsel %vm787, %v1140, 0
      %v1171 = vsel %vm787, %v1141, 0
      %v1174 = vsel %vm787, %v1142, 0
      %v1177 = vsel %vm787, %v1143, 0
      %v1180 = vsel %vm787, %v1144, 0
      %v1183 = vsel %vm787, %v1145, 0
      %v1186 = vsel %vm787, %v1146, 0
      %v1189 = vsel %vm787, %v1147, 0
      %v1192 = vsel %vm787, %v1148, 0
      %v1195 = vsel %vm787, %v1149, 0
      %v1198 = vsel %vm787, %v1150, 0
      %v1201 = vsel %vm787, %v1151, 0
      %1203 = vmatpush.xpose.msra.mxu0 %v1201
      %1204 = vmatpush.xpose.msra.mxu0 %v1198
      %1205 = vmatpush.xpose.msra.mxu0 %v1195
      %1206 = vmatpush.xpose.msra.mxu0 %v1192
      %1207 = vmatpush.xpose.msra.mxu0 %v1189
      %1208 = vmatpush.xpose.msra.mxu0 %v1186
      %1209 = vmatpush.xpose.msra.mxu0 %v1183
      %1210 = vmatpush.xpose.msra.mxu0 %v1180
      %1211 = vmatpush.xpose.msra.mxu0 %v1177
      %1212 = vmatpush.xpose.msra.mxu0 %v1174
      %1213 = vmatpush.xpose.msra.mxu0 %v1171
      %1214 = vmatpush.xpose.msra.mxu0 %v1168
      %1215 = vmatpush.xpose.msra.mxu0 %v1165
      %1216 = vmatpush.xpose.msra.mxu0 %v1162
      %1217 = vmatpush.xpose.msra.mxu0 %v1159
      %1218 = vmatpush.xpose.msra.mxu0 %v1156
      %1219 = vmatmul.f32.gmra.mxu0 %v1153
      %v1220 = vpop.f32.mrf.mxu0
      %v1221 = vadd.f32 0.0, %v1220
      %1222 = vdwg.mxu0
      %v1223 = vadd.f32 %v1134, %v1221
      %vm1224 = vcmask 39936
      %v1226 = vsel %vm1224, %v993, 0
      %v1229 = vsel %vm1224, %v740, 0
      %v1232 = vsel %vm1224, %v743, 0
      %v1235 = vsel %vm1224, %v746, 0
      %v1238 = vsel %vm1224, %v749, 0
      %v1241 = vsel %vm1224, %v752, 0
      %v1244 = vsel %vm1224, %v755, 0
      %v1247 = vsel %vm1224, %v758, 0
      %v1250 = vsel %vm1224, %v761, 0
      %v1253 = vsel %vm1224, %v764, 0
      %v1256 = vsel %vm1224, %v767, 0
      %v1259 = vsel %vm1224, %v770, 0
      %v1262 = vsel %vm1224, %v773, 0
      %v1265 = vsel %vm1224, %v776, 0
      %v1268 = vsel %vm1224, %v779, 0
      %v1271 = vsel %vm1224, %v782, 0
      %v1274 = vsel %vm1224, %v785, 0
      %1276 = vmatpush.xpose.msra.mxu0 %v1274
      %1277 = vmatpush.xpose.msra.mxu0 %v1271
      %1278 = vmatpush.xpose.msra.mxu0 %v1268
      %1279 = vmatpush.xpose.msra.mxu0 %v1265
      %1280 = vmatpush.xpose.msra.mxu0 %v1262
      %1281 = vmatpush.xpose.msra.mxu0 %v1259
      %1282 = vmatpush.xpose.msra.mxu0 %v1256
      %1283 = vmatpush.xpose.msra.mxu0 %v1253
      %1284 = vmatpush.xpose.msra.mxu0 %v1250
      %1285 = vmatpush.xpose.msra.mxu0 %v1247
      %1286 = vmatpush.xpose.msra.mxu0 %v1244
      %1287 = vmatpush.xpose.msra.mxu0 %v1241
      %1288 = vmatpush.xpose.msra.mxu0 %v1238
      %1289 = vmatpush.xpose.msra.mxu0 %v1235
      %1290 = vmatpush.xpose.msra.mxu0 %v1232
      %1291 = vmatpush.xpose.msra.mxu0 %v1229
      %1292 = vmatmul.f32.gmra.mxu0 %v1226
      %v1293 = vpop.f32.mrf.mxu0
      %v1294 = vadd.f32 0.0, %v1293
      %1295 = vdwg.mxu0
      %v1296 = vadd.f32 %v1223, %v1294
      %v1297 = vlog2.pop %v1296
      %v1298 = vmul.f32 %v1297, 0.6931472
      %v1299 = vrcp.pop %v1296
      %v1300 = vmul.f32 %v1296, %v1299
      %v1301 = vsub.f32 2.0, %v1300
      %v1302 = vmul.f32 %v1299, %v1301
      %v1304 = vrot.slane %v1298, 1
      %v1306 = vsub.f32 %v1296, %v1304
      %v1308 = vrot.slane %v1302, 7
      %v1310 = vmul.f32 %v1296, %v1308
      %v1312 = vrot.slane %v1310, 1
      %v1314 = vsub.f32 %v1298, %v1312
      %v1316 = vrot.slane %v1296, 2
      %v1319 = vrot.slane %v1314, 7
      %vm1321 = vcmask 1040384
      %v1322 = vsel %vm1321, %v1306, %v1316
      %vm1323 = vcmask 1041408
      %v1324 = vsel %vm1323, %v1322, %v1319
      %vm1325 = vcmask 1042432
      %v1326 = vsel %vm1325, %v1324, 0.0
      %1327 = vst [vmem:[%s367] sm:$0xff] %v1326
      %p1328 = scmp.lt.s32.totalorder %s19, 2
      %s1329 = scalar_select %p1328, %s19, 2
      %s1330 = smul.addr %s1329, 8
      %s1331 = scalar_lea.vmem %s8, %s1330
      // Predicated region
      $region53: #{actor_critic_evaluate.1} parent=51 // pred_check
        %p1332 = pneg %p215
      $region54: #{actor_critic_evaluate.1} parent=51 // pred_check_branch
        %1334 = sbr.rel (%p1332) target = $region56
      $region55: #{actor_critic_evaluate.1} parent=51 // pred_region
        _
      $region56: #{actor_critic_evaluate.1} parent=51 // pred_fallthru
        _
    $region52: #{actor_critic_evaluate.1} parent=5 // pred_fallthru
      _
    %p1335 = scmp.le.s32.totalorder 2, %s14
    // Predicated region
    $region57: #{actor_critic_evaluate.1} parent=5 // pred_check
      %p1336 = pneg %p1335
    $region58: #{actor_critic_evaluate.1} parent=5 // pred_check_branch
      %1338 = sbr.rel (%p1336) target = $region60
    $region59: #{actor_critic_evaluate.1} parent=5 // pred_region
      %s1339 = ssub.s32 %s14, 2
      // Predicated region
      $region61: #{actor_critic_evaluate.1} parent=59 // pred_check
        %p1340 = pneg %p221
      $region62: #{actor_critic_evaluate.1} parent=59 // pred_check_branch
        %1342 = sbr.rel (%p1340) target = $region64
      $region63: #{actor_critic_evaluate.1} parent=59 // pred_region
        %p1343 = scmp.lt.s32.totalorder %s20, 2
        %s1344 = scalar_select %p1343, %s20, 2
        %s1345 = smul.addr %s1344, 8
        %s1346 = scalar_lea.vmem %s8, %s1345
      $region64: #{actor_critic_evaluate.1} parent=59 // pred_fallthru
        _
    $region60: #{actor_critic_evaluate.1} parent=5 // pred_fallthru
      _
  $region6: #{actor_critic_evaluate.1} parent=0 // loop_footer
    %s18 = sadd.s32 1, %s14
  $region7: #{actor_critic_evaluate.1} parent=0 // loop_footer_branch
    %13 = sbr.rel target = $region3
  $region8: #{actor_critic_evaluate.1} parent=0 // loop_exit
    _

</llo_original>
